<compile_context>
chip_gen: v6e
topology: v6e:2x2x1
jax: 0.10.0
libtpu: 0.0.40
codegen_flags: <defaults>
</compile_context>

<pallas_src>
import math

import jax
import jax.numpy as jnp
from jax import lax
from jax.experimental import pallas as pl
from jax.experimental.pallas import tpu as pltpu


def _adacos_main_kernel(scale_ref, labels_ref, feats_ref, w_ref,
                        logits_ref, tgt_ref, bsum_ref, xn_ref):
    j = pl.program_id(1)                    # C-tile index (reduction axis)

    @pl.when(j == 0)
    def _():
        x = feats_ref[...]                  # (TB, D) f32
        sumsq = jnp.sum(x * x, axis=-1, keepdims=True)
        # F.normalize: x / max(||x||, 1e-12) == x * rsqrt(max(||x||^2, 1e-24))
        xn_ref[...] = x * lax.rsqrt(jnp.maximum(sumsq, jnp.float32(1e-24)))
        tgt_ref[...] = jnp.zeros_like(tgt_ref)
        bsum_ref[...] = jnp.zeros_like(bsum_ref)

    # normalize this W tile (redone per B-tile; avoids an extra C*D HBM pass)
    w = w_ref[...]                          # (TN, D) f32
    wn = w * lax.rsqrt(jnp.maximum(jnp.sum(w * w, axis=-1, keepdims=True),
                                   jnp.float32(1e-24)))

    # cosine logits: bf16 MXU operands, f32 accumulation
    logits = lax.dot_general(xn_ref[...].astype(jnp.bfloat16),
                             wn.astype(jnp.bfloat16),
                             (((1,), (1,)), ((), ())),
                             preferred_element_type=jnp.float32)   # (TB, TN)
    tb, tn = logits.shape

    labels = labels_ref[...]                                        # (TB, 1) i32
    class_ids = lax.broadcasted_iota(jnp.int32, (tb, tn), 1) + j * tn
    one_hot = class_ids == labels                                   # (TB, TN)

    scale = scale_ref[0]
    # B_avg numerator: sum over non-target entries of exp(scale * logits)
    bvals = jnp.where(one_hot, jnp.float32(0.0), jnp.exp(scale * logits))
    bsum_ref[...] += jnp.sum(bvals, axis=1, keepdims=True)
    # target cosine (logit at the label position) per row
    tgt_ref[...] += jnp.sum(jnp.where(one_hot, logits, jnp.float32(0.0)),
                            axis=1, keepdims=True)

    logits_ref[...] = logits


def _choose_tile(n, candidates):
    for c in candidates:
        if c <= n and n % c == 0:
            return c
    return n                                 # full-extent block (always legal)


def adacos_forward(feats, labels, W, num_classes, scale=None):
    """Returns (scale_new * logits, scale_new). Stateless: caller keeps scale."""
    B, D = feats.shape
    C = num_classes
    assert W.shape == (C, D)
    if scale is None:
        scale = math.sqrt(2.0) * math.log(C - 1)     # AdaCos.__init__ value
    scale_arr = jnp.asarray(scale, dtype=jnp.float32).reshape(1)

    # Tiles: TN lane-dense multiple of 128 (or full C), TB multiple of 8 (or full B).
    TB = _choose_tile(B, (256, 128, 64, 32, 16, 8))
    TN = _choose_tile(C, (1024, 512, 256, 128))
    nb, nc = B // TB, C // TN

    labels2d = labels.astype(jnp.int32).reshape(B, 1)
    feats = feats.astype(jnp.float32)
    W = W.astype(jnp.float32)

    # VMEM budget: double-buffered input/output tiles + xn scratch; keep headroom
    # and cap below v7x's 64 MiB physical VMEM.
    est = 4 * (2 * TB * D + 2 * TN * D + 2 * TB * TN + TB * D + 8 * TB)
    vmem_limit = int(min(max(2 * est, 32 * 1024 * 1024), 56 * 1024 * 1024))

    logits, tgt, bsum = pl.pallas_call(
        _adacos_main_kernel,
        out_shape=(jax.ShapeDtypeStruct((B, C), jnp.float32),
                   jax.ShapeDtypeStruct((B, 1), jnp.float32),
                   jax.ShapeDtypeStruct((B, 1), jnp.float32)),
        grid=(nb, nc),
        in_specs=[pl.BlockSpec(memory_space=pltpu.MemorySpace.SMEM),   # scale
                  pl.BlockSpec((TB, 1), lambda i, j: (i, 0)),          # labels
                  pl.BlockSpec((TB, D), lambda i, j: (i, 0)),          # feats
                  pl.BlockSpec((TN, D), lambda i, j: (j, 0))],         # W
        out_specs=(pl.BlockSpec((TB, TN), lambda i, j: (i, j)),        # logits
                   pl.BlockSpec((TB, 1), lambda i, j: (i, 0)),         # tgt acc
                   pl.BlockSpec((TB, 1), lambda i, j: (i, 0))),        # bsum acc
        scratch_shapes=[pltpu.VMEM((TB, D), jnp.float32)],             # xn
        compiler_params=pltpu.CompilerParams(
            dimension_semantics=("parallel", "arbitrary"),
            vmem_limit_bytes=vmem_limit),
        cost_estimate=pl.CostEstimate(
            flops=2 * B * C * D,
            transcendentals=B * C,
            bytes_accessed=4 * (B * D + C * D + B * C)),
    )(scale_arr, labels2d, feats, W)

    # --- scalar epilogue (the torch.no_grad() block), on O(B) values only ---
    B_avg = jnp.sum(bsum) / jnp.float32(B)
    theta_tgt = jnp.arccos(jnp.clip(tgt[:, 0], -1.0 + 1e-7, 1.0 - 1e-7))
    theta_med = jnp.sort(theta_tgt)[(B - 1) // 2]   # torch.median = lower median
    scale_new = jnp.log(B_avg) / jnp.cos(
        jnp.minimum(jnp.float32(math.pi / 4.0), theta_med))

    # scalar * (B, C) is pure HBM-roofline work; plain JAX handles it optimally.
    out = scale_new * logits

    # TODO(synk): PyTorch mutates self.scale in-place; stateless here, so the
    # updated scale is returned alongside the output instead.
    return out, scale_new


def _reference(feats, labels, W, C, scale0):
    wn = W / jnp.maximum(jnp.linalg.norm(W, axis=1, keepdims=True), 1e-12)
    xn = feats / jnp.maximum(jnp.linalg.norm(feats, axis=1, keepdims=True), 1e-12)
    logits = xn @ wn.T
    one_hot = jax.nn.one_hot(labels, C, dtype=jnp.float32)
    theta = jnp.arccos(jnp.clip(logits, -1.0 + 1e-7, 1.0 - 1e-7))
    B_avg = jnp.sum(jnp.where(one_hot < 1, jnp.exp(scale0 * logits), 0.0)) / feats.shape[0]
    theta_tgt = jnp.sum(jnp.where(one_hot > 0, theta, 0.0), axis=1)
    theta_med = jnp.sort(theta_tgt)[(feats.shape[0] - 1) // 2]
    s = jnp.log(B_avg) / jnp.cos(jnp.minimum(jnp.float32(math.pi / 4.0), theta_med))
    return s * logits, s


if __name__ == "__main__":
    B, D, C = 8, 32, 16   # batch, feat_dim, num_classes
    key = jax.random.PRNGKey(0)
    kf, kl, kw = jax.random.split(key, 3)

    feats = jax.random.normal(kf, (B, D), dtype=jnp.float32)
    labels = jax.random.randint(kl, (B,), 0, C, dtype=jnp.int32)

    # xavier_uniform_ for W of shape (num_classes, feat_dim): fan_in=D, fan_out=C
    bound = math.sqrt(6.0 / (D + C))
    W = jax.random.uniform(kw, (C, D), minval=-bound, maxval=bound,
                           dtype=jnp.float32)

    out, new_scale = adacos_forward(feats, labels, W, C)
    out = jax.block_until_ready(out)
    new_scale = jax.block_until_ready(new_scale)

    assert out.shape == (B, C)
    assert bool(jnp.all(jnp.isfinite(out)))

    # compare against a pure-f32 JAX reference (generous tol for bf16 MXU operands)
    ref_out, ref_scale = _reference(feats, labels, W, C,
                                    math.sqrt(2.0) * math.log(C - 1))
    assert bool(jnp.allclose(out, ref_out, atol=2e-1, rtol=2e-1))
    assert bool(jnp.allclose(new_scale, ref_scale, atol=1e-1, rtol=1e-1))

    print("KERNEL_OK")
</pallas_src>

<mosaic_0001>
module attributes {stable_mosaic.version = 11 : i64} {
  func.func @_adacos_main_kernel(%arg0: i32, %arg1: i32, %arg2: memref<1xf32, #tpu.memory_space<smem>>, %arg3: memref<8x1xi32, #tpu.memory_space<vmem>>, %arg4: memref<8x32xf32, #tpu.memory_space<vmem>>, %arg5: memref<16x32xf32, #tpu.memory_space<vmem>>, %arg6: memref<8x16xf32, #tpu.memory_space<vmem>>, %arg7: memref<8x1xf32, #tpu.memory_space<vmem>>, %arg8: memref<8x1xf32, #tpu.memory_space<vmem>>, %arg9: memref<8x32xf32, #tpu.memory_space<vmem>>) attributes {dimension_semantics = [#tpu.dimension_semantics<parallel>, #tpu.dimension_semantics<arbitrary>], iteration_bounds = array<i64: 1, 1>, scalar_prefetch = 0 : i64, scratch_operands = 1 : i64, tpu.core_type = #tpu.core_type<tc>, window_params = [{transform_indices = @transform_0, window_bounds = array<i64: 1>}, {transform_indices = @transform_1, window_bounds = array<i64: 8, 1>}, {transform_indices = @transform_2, window_bounds = array<i64: 8, 32>}, {transform_indices = @transform_3, window_bounds = array<i64: 16, 32>}, {transform_indices = @transform_4, window_bounds = array<i64: 8, 16>}, {transform_indices = @transform_5, window_bounds = array<i64: 8, 1>}, {transform_indices = @transform_6, window_bounds = array<i64: 8, 1>}]} {
    %c0_i32 = arith.constant 0 : i32
    %0 = arith.cmpi eq, %arg1, %c0_i32 : i32
    %1 = arith.extui %0 : i1 to i32
    %c0_i32_0 = arith.constant 0 : i32
    %2 = arith.cmpi ne, %1, %c0_i32_0 : i32
    scf.if %2 {
      %c0_23 = arith.constant 0 : index
      %c0_24 = arith.constant 0 : index
      %42 = vector.load %arg4[%c0_23, %c0_24] : memref<8x32xf32, #tpu.memory_space<vmem>>, vector<8x32xf32>
      %43 = arith.mulf %42, %42 : vector<8x32xf32>
      %cst_25 = arith.constant dense<0.000000e+00> : vector<8xf32>
      %44 = vector.multi_reduction <add>, %43, %cst_25 [1] : vector<8x32xf32> to vector<8xf32>
      %45 = vector.shape_cast %44 : vector<8xf32> to vector<8x1xf32>
      %cst_26 = arith.constant 1.000000e-24 : f32
      %46 = vector.broadcast %cst_26 : f32 to vector<8x1xf32>
      %47 = arith.maximumf %45, %46 : vector<8x1xf32>
      %48 = math.rsqrt %47 : vector<8x1xf32>
      %49 = vector.broadcast %48 : vector<8x1xf32> to vector<8x32xf32>
      %50 = arith.mulf %42, %49 : vector<8x32xf32>
      %c0_27 = arith.constant 0 : index
      %c0_28 = arith.constant 0 : index
      %51 = vector.load %arg9[%c0_27, %c0_28] : memref<8x32xf32, #tpu.memory_space<vmem>>, vector<8x32xf32>
      tpu.vector_store %arg9[%c0_27, %c0_28], %50 {strides = array<i32>} : memref<8x32xf32, #tpu.memory_space<vmem>>, vector<8x32xf32>,
      %cst_29 = arith.constant 0.000000e+00 : f32
      %52 = vector.broadcast %cst_29 : f32 to vector<8x1xf32>
      %c0_30 = arith.constant 0 : index
      %c0_31 = arith.constant 0 : index
      %53 = vector.load %arg7[%c0_30, %c0_31] : memref<8x1xf32, #tpu.memory_space<vmem>>, vector<8x1xf32>
      tpu.vector_store %arg7[%c0_30, %c0_31], %52 {strides = array<i32>} : memref<8x1xf32, #tpu.memory_space<vmem>>, vector<8x1xf32>,
      %cst_32 = arith.constant 0.000000e+00 : f32
      %54 = vector.broadcast %cst_32 : f32 to vector<8x1xf32>
      %c0_33 = arith.constant 0 : index
      %c0_34 = arith.constant 0 : index
      %55 = vector.load %arg8[%c0_33, %c0_34] : memref<8x1xf32, #tpu.memory_space<vmem>>, vector<8x1xf32>
      tpu.vector_store %arg8[%c0_33, %c0_34], %54 {strides = array<i32>} : memref<8x1xf32, #tpu.memory_space<vmem>>, vector<8x1xf32>,
    } else {
    }
    %c0 = arith.constant 0 : index
    %c0_1 = arith.constant 0 : index
    %3 = vector.load %arg5[%c0, %c0_1] : memref<16x32xf32, #tpu.memory_space<vmem>>, vector<16x32xf32>
    %4 = arith.mulf %3, %3 : vector<16x32xf32>
    %cst = arith.constant dense<0.000000e+00> : vector<16xf32>
    %5 = vector.multi_reduction <add>, %4, %cst [1] : vector<16x32xf32> to vector<16xf32>
    %6 = vector.shape_cast %5 : vector<16xf32> to vector<16x1xf32>
    %cst_2 = arith.constant 1.000000e-24 : f32
    %7 = vector.broadcast %cst_2 : f32 to vector<16x1xf32>
    %8 = arith.maximumf %6, %7 : vector<16x1xf32>
    %9 = math.rsqrt %8 : vector<16x1xf32>
    %10 = vector.broadcast %9 : vector<16x1xf32> to vector<16x32xf32>
    %11 = arith.mulf %3, %10 : vector<16x32xf32>
    %c0_3 = arith.constant 0 : index
    %c0_4 = arith.constant 0 : index
    %12 = vector.load %arg9[%c0_3, %c0_4] : memref<8x32xf32, #tpu.memory_space<vmem>>, vector<8x32xf32>
    %13 = arith.truncf %12 : vector<8x32xf32> to vector<8x32xbf16>
    %14 = arith.truncf %11 : vector<16x32xf32> to vector<16x32xbf16>
    %cst_5 = arith.constant dense<0.000000e+00> : vector<8x16xf32>
    %15 = tpu.matmul %13, %14, %cst_5 {dimension_numbers = #tpu.dot_dimension_numbers<[1], [1], [0], [0], [0, 0, 1, 0], [], []>} : vector<8x32xbf16>, vector<16x32xbf16>, vector<8x16xf32> -> vector<8x16xf32>
    %c0_6 = arith.constant 0 : index
    %c0_7 = arith.constant 0 : index
    %16 = vector.load %arg3[%c0_6, %c0_7] : memref<8x1xi32, #tpu.memory_space<vmem>>, vector<8x1xi32>
    %17 = tpu.iota {dimensions = array<i32: 1>} : vector<8x16xi32>
    %c16_i32 = arith.constant 16 : i32
    %18 = arith.muli %arg1, %c16_i32 : i32
    %19 = vector.broadcast %18 : i32 to vector<8x16xi32>
    %20 = arith.addi %17, %19 : vector<8x16xi32>
    %21 = vector.broadcast %16 : vector<8x1xi32> to vector<8x16xi32>
    %22 = arith.cmpi eq, %20, %21 : vector<8x16xi32>
    %c0_8 = arith.constant 0 : index
    %23 = memref.load %arg2[%c0_8] : memref<1xf32, #tpu.memory_space<smem>>
    %24 = vector.broadcast %23 : f32 to vector<8x16xf32>
    %25 = arith.mulf %24, %15 : vector<8x16xf32>
    %26 = math.exp %25 : vector<8x16xf32>
    %cst_9 = arith.constant 0.000000e+00 : f32
    %27 = vector.broadcast %cst_9 : f32 to vector<8x16xf32>
    %28 = arith.select %22, %27, %26 : vector<8x16xi1>, vector<8x16xf32>
    %c0_10 = arith.constant 0 : index
    %c0_11 = arith.constant 0 : index
    %29 = vector.load %arg8[%c0_10, %c0_11] : memref<8x1xf32, #tpu.memory_space<vmem>>, vector<8x1xf32>
    %cst_12 = arith.constant dense<0.000000e+00> : vector<8xf32>
    %30 = vector.multi_reduction <add>, %28, %cst_12 [1] : vector<8x16xf32> to vector<8xf32>
    %31 = vector.shape_cast %30 : vector<8xf32> to vector<8x1xf32>
    %32 = arith.addf %29, %31 : vector<8x1xf32>
    %c0_13 = arith.constant 0 : index
    %c0_14 = arith.constant 0 : index
    %33 = vector.load %arg8[%c0_13, %c0_14] : memref<8x1xf32, #tpu.memory_space<vmem>>, vector<8x1xf32>
    tpu.vector_store %arg8[%c0_13, %c0_14], %32 {strides = array<i32>} : memref<8x1xf32, #tpu.memory_space<vmem>>, vector<8x1xf32>,
    %c0_15 = arith.constant 0 : index
    %c0_16 = arith.constant 0 : index
    %34 = vector.load %arg7[%c0_15, %c0_16] : memref<8x1xf32, #tpu.memory_space<vmem>>, vector<8x1xf32>
    %cst_17 = arith.constant 0.000000e+00 : f32
    %35 = vector.broadcast %cst_17 : f32 to vector<8x16xf32>
    %36 = arith.select %22, %15, %35 : vector<8x16xi1>, vector<8x16xf32>
    %cst_18 = arith.constant dense<0.000000e+00> : vector<8xf32>
    %37 = vector.multi_reduction <add>, %36, %cst_18 [1] : vector<8x16xf32> to vector<8xf32>
    %38 = vector.shape_cast %37 : vector<8xf32> to vector<8x1xf32>
    %39 = arith.addf %34, %38 : vector<8x1xf32>
    %c0_19 = arith.constant 0 : index
    %c0_20 = arith.constant 0 : index
    %40 = vector.load %arg7[%c0_19, %c0_20] : memref<8x1xf32, #tpu.memory_space<vmem>>, vector<8x1xf32>
    tpu.vector_store %arg7[%c0_19, %c0_20], %39 {strides = array<i32>} : memref<8x1xf32, #tpu.memory_space<vmem>>, vector<8x1xf32>,
    %c0_21 = arith.constant 0 : index
    %c0_22 = arith.constant 0 : index
    %41 = vector.load %arg6[%c0_21, %c0_22] : memref<8x16xf32, #tpu.memory_space<vmem>>, vector<8x16xf32>
    tpu.vector_store %arg6[%c0_21, %c0_22], %15 {strides = array<i32>} : memref<8x16xf32, #tpu.memory_space<vmem>>, vector<8x16xf32>,
    return
  }
  func.func @transform_0(%arg0: i32, %arg1: i32) -> i32 {
    %c0_i32 = arith.constant 0 : i32
    %c0_i32_0 = arith.constant 0 : i32
    return %c0_i32 : i32
  }
  func.func @transform_1(%arg0: i32, %arg1: i32) -> (i32, i32) {
    %c0_i32 = arith.constant 0 : i32
    %c0_i32_0 = arith.constant 0 : i32
    return %arg0, %c0_i32 : i32, i32
  }
  func.func @transform_2(%arg0: i32, %arg1: i32) -> (i32, i32) {
    %c0_i32 = arith.constant 0 : i32
    %c0_i32_0 = arith.constant 0 : i32
    return %arg0, %c0_i32 : i32, i32
  }
  func.func @transform_3(%arg0: i32, %arg1: i32) -> (i32, i32) {
    %c0_i32 = arith.constant 0 : i32
    %c0_i32_0 = arith.constant 0 : i32
    return %arg1, %c0_i32 : i32, i32
  }
  func.func @transform_4(%arg0: i32, %arg1: i32) -> (i32, i32) {
    %c0_i32 = arith.constant 0 : i32
    return %arg0, %arg1 : i32, i32
  }
  func.func @transform_5(%arg0: i32, %arg1: i32) -> (i32, i32) {
    %c0_i32 = arith.constant 0 : i32
    %c0_i32_0 = arith.constant 0 : i32
    return %arg0, %c0_i32 : i32, i32
  }
  func.func @transform_6(%arg0: i32, %arg1: i32) -> (i32, i32) {
    %c0_i32 = arith.constant 0 : i32
    %c0_i32_0 = arith.constant 0 : i32
    return %arg0, %c0_i32 : i32, i32
  }
}

</mosaic_0001>

<llo_original>
// kernel: tpu_custom_call.1
$region0: #{tpu_custom_call.1}
  #allocation0 [shape = 'u32[]', space=smem, size = 0x4, offset = 0x4, fixed_abs, tag = 'smem constant byte address 0x4 - core index']
  #allocation1 [shape = 'u32[144,128]{1,0:T(1,128)}', space=vmem, size = 0x12000, scoped, tag = 'internal scratch']
  #allocation2 [shape = 'f32[8,32]{1,0:T(8,128)}', space=vmem, size = 0x1000, scoped, tag = 'scratch operand']
  #allocation3 [shape = 'f32[1]{0:T(128)S(6)}', space=smem, size = 0x200, scoped, tag = 'scoped memory for tpu_custom_call.1']
  %s0 = inlined_call_operand.<no memory space> [shape: f32[1], index: 0, kind: input, shape index: {}]
  %s1 = inlined_call_operand.vmem [shape: s32[8,1], index: 1, kind: input, shape index: {}]
  %s2 = inlined_call_operand.vmem [shape: f32[8,32], index: 2, kind: input, shape index: {}]
  %s3 = inlined_call_operand.hbm [shape: f32[16,32], index: 3, kind: input, shape index: {}]
  %s4 = inlined_call_operand.hbm [shape: f32[8,16], index: 4, kind: output, shape index: {0}]
  %s5 = inlined_call_operand.vmem [shape: f32[8,1], index: 5, kind: output, shape index: {1}]
  %s6 = inlined_call_operand.vmem [shape: f32[8,1], index: 6, kind: output, shape index: {2}]
  %7 = xla_tuple %s4, %s5, %s6
  %s8 = sld [smem:[#allocation0]]
  $region50: #{tpu_custom_call.1} parent=0
    _
  %s10 = ssub.s32 1, %s8
  %s11 = scalar_select 0, %s10, %s8
  %12 = sst [smem:[#allocation3]] %s0
  $region1: #{tpu_custom_call.1} parent=0
    #allocation4 [shape = 'u8[8192]{0}', space=vmem, size = 0x2000, scoped, tag = 'input window, operand 3, single buffered']
    #allocation5 [shape = 's32[1]{0}', space=sflag, size = 0x4, scoped, tag = 'scoped memory for tpu_custom_call.1']
    #allocation6 [shape = 's32[1]{0}', space=sflag, size = 0x4, scoped, tag = 'scoped memory for tpu_custom_call.1']
    #allocation7 [shape = 'u8[4096]{0}', space=vmem, size = 0x1000, scoped, tag = 'output window, operand 0, single buffered']
    %13 = vsyncpa [#allocation5], 0
    %14 = vsyncpa [#allocation6], 0
    // Predicated region
    $region2: #{tpu_custom_call.1} parent=1 // pred_check
      _
    $region3: #{tpu_custom_call.1} parent=1 // pred_check_branch
      %16 = sbr.rel (0) target = $region5
    $region4: #{tpu_custom_call.1} parent=1 // pred_region
      _
    $region5: #{tpu_custom_call.1} parent=1 // pred_fallthru
      _
    // Predicated region
    $region6: #{tpu_custom_call.1} parent=1 // pred_check
      _
    $region7: #{tpu_custom_call.1} parent=1 // pred_check_branch
      %18 = sbr.rel (0) target = $region9
    $region8: #{tpu_custom_call.1} parent=1 // pred_region
      _
    $region9: #{tpu_custom_call.1} parent=1 // pred_fallthru
      _
    // Predicated region
    $region10: #{tpu_custom_call.1} parent=1 // pred_check
      _
    $region11: #{tpu_custom_call.1} parent=1 // pred_check_branch
      %20 = sbr.rel (0) target = $region13
    $region12: #{tpu_custom_call.1} parent=1 // pred_region
      _
    $region13: #{tpu_custom_call.1} parent=1 // pred_fallthru
      _
    // Predicated region
    $region14: #{tpu_custom_call.1} parent=1 // pred_check
      _
    $region15: #{tpu_custom_call.1} parent=1 // pred_check_branch
      %22 = sbr.rel (0) target = $region17
    $region16: #{tpu_custom_call.1} parent=1 // pred_region
      %s24 = ssub.s32 256, 256
      %25 = vsyncadd [#allocation5], %s24
      %s26 = sshll.u32 [#allocation4], 4
      %s27 = int_to_ptr.vmem [resolvable:$true] %s26
      %32 = dma.hbm_to_vmem [thread:$0]  %s3, 256, %s27, [#allocation5], 128, 128, 8
    $region17: #{tpu_custom_call.1} parent=1 // pred_fallthru
      _
    // Predicated region
    $region18: #{tpu_custom_call.1} parent=1 // pred_check
      _
    $region19: #{tpu_custom_call.1} parent=1 // pred_check_branch
      %34 = sbr.rel (0) target = $region21
    $region20: #{tpu_custom_call.1} parent=1 // pred_region
      %35 = dma.done [#allocation5], 256
    $region21: #{tpu_custom_call.1} parent=1 // pred_fallthru
      _
    %p37 = scmp.eq.s32.totalorder 0, 0
    // Predicated region
    $region22: #{tpu_custom_call.1} parent=1 // pred_check
      %p38 = pneg %p37
    $region23: #{tpu_custom_call.1} parent=1 // pred_check_branch
      %40 = sbr.rel (%p38) target = $region25
    $region24: #{tpu_custom_call.1} parent=1 // pred_region
      %v41 = vld [vmem:[%s2] sm:$0xff]
      %v42 = vmul.f32 %v41, %v41
      %vm43 = vcmask 261120
      %v44 = vsel %vm43, %v42, 0.0
      %45 = vadd.xlane.f32.xlu0 %v44
      %v46 = vpop.xlane.xlu0 %45
      %v47 = vmax.f32 %v46, 1e-24
      %v48 = vrsqrt.pop %v47
      %v49 = vmul.f32 %v41, %v48
      %50 = vst.msk [vmem:[#allocation2] sm:$0xff] %vm43, %v49
      %vm51 = vcmask 7168
      %52 = vst.msk [vmem:[%s5] sm:$0xff] %vm51, 0.0
      %53 = vst.msk [vmem:[%s6] sm:$0xff] %vm51, 0.0
    $region25: #{tpu_custom_call.1} parent=1 // pred_fallthru
      _
    %v54 = vld [vmem:[#allocation4] sm:$0xff]
    %v55 = vld [vmem:[#allocation4 + $0x8] sm:$0xff]
    %v56 = vmul.f32 %v54, %v54
    %v57 = vmul.f32 %v55, %v55
    %vm58 = vcmask 261120
    %v59 = vsel %vm58, %v56, 0.0
    %60 = vadd.xlane.f32.xlu0 %v59
    %v61 = vpop.xlane.xlu0 %60
    %v62 = vsel %vm58, %v57, 0.0
    %63 = vadd.xlane.f32.xlu0 %v62
    %v64 = vpop.xlane.xlu0 %63
    %v65 = vmax.f32 %v61, 1e-24
    %v66 = vmax.f32 %v64, 1e-24
    %v67 = vrsqrt.pop %v65
    %v68 = vrsqrt.pop %v66
    %v69 = vmul.f32 %v54, %v67
    %v70 = vmul.f32 %v55, %v68
    %v71 = vld [vmem:[#allocation2] sm:$0xff]
    %v72 = vpack.c.bf16 %v71, %v71
    %v73 = vpack.c.bf16 %v70, %v69
    %v75 = vsel %vm58, %v72, 0
    %v78 = vsel %vm58, %v73, 0
    %80 = vmatprep.subr.bf16.mxu0 0
    %81 = vmatpush1.bf16.xpose.msra.mxu0 0
    %82 = vmatprep.subr.bf16.mxu0 0
    %83 = vmatpush1.bf16.xpose.msra.mxu0 0
    %84 = vmatprep.subr.bf16.mxu0 0
    %85 = vmatpush1.bf16.xpose.msra.mxu0 0
    %86 = vmatprep.subr.bf16.mxu0 0
    %87 = vmatpush1.bf16.xpose.msra.mxu0 0
    %88 = vmatprep.subr.bf16.mxu0 0
    %89 = vmatpush1.bf16.xpose.msra.mxu0 0
    %90 = vmatprep.subr.bf16.mxu0 0
    %91 = vmatpush1.bf16.xpose.msra.mxu0 0
    %92 = vmatprep.subr.bf16.mxu0 0
    %93 = vmatpush1.bf16.xpose.msra.mxu0 0
    %94 = vmatprep.subr.bf16.mxu0 0
    %95 = vmatpush1.bf16.xpose.msra.mxu0 %v78
    %96 = vmatprep.subr.bf16.mxu0 0
    %97 = vmatpush2.bf16.xpose.msra.mxu0 0
    %98 = vmatprep.subr.bf16.mxu0 0
    %99 = vmatpush2.bf16.xpose.msra.mxu0 0
    %100 = vmatprep.subr.bf16.mxu0 0
    %101 = vmatpush2.bf16.xpose.msra.mxu0 0
    %102 = vmatprep.subr.bf16.mxu0 0
    %103 = vmatpush2.bf16.xpose.msra.mxu0 0
    %104 = vmatprep.subr.bf16.mxu0 0
    %105 = vmatpush2.bf16.xpose.msra.mxu0 0
    %106 = vmatprep.subr.bf16.mxu0 0
    %107 = vmatpush2.bf16.xpose.msra.mxu0 0
    %108 = vmatprep.subr.bf16.mxu0 0
    %109 = vmatpush2.bf16.xpose.msra.mxu0 0
    %110 = vmatprep.subr.bf16.mxu0 0
    %111 = vmatpush2.bf16.xpose.msra.mxu0 0
    %112 = vmatprep.mubr.bf16.mxu0 0
    %113 = vmatmul.mubr.bf16.gmra.mxu0 %v75
    %v114 = vpop.f32.mrf.mxu0
    %v115 = vadd.f32 0.0, %v114
    %v116 = vpop.f32.mrf.mxu0
    %v117 = vpop.f32.mrf.mxu0
    %v118 = vpop.f32.mrf.mxu0
    %119 = vdwg.mxu0
    %v120 = vld [vmem:[%s1] sm:$0xff]
    %v121 = vlaneseq
    %v122 = vand.u32 %v121, 127
    %s123 = smul.u32 0, 16
    %v124 = vstv %s123
    %v125 = vadd.s32 %v122, %v124
    %126 = vset.pattern.permute.xlu0 0
    %127 = vperm.xlu0 %126, %v120
    %v128 = vpop.permute.xlu0 %127
    %vm129 = vcmp.eq.s32.totalorder %v125, %v128
    %s130 = sld [smem:[#allocation3]]
    %v131 = vstv %s130
    %v132 = vmul.f32 %v131, %v115
    %v133 = vmul.f32 %v132, 1.442695
    %v134 = vpow.pop %v133
    %v135 = vsel %vm129, 0.0, %v134
    %v136 = vld [vmem:[%s6] sm:$0xff]
    %vm137 = vcmask 130048
    %v138 = vsel %vm137, %v135, 0.0
    %139 = vadd.xlane.f32.xlu0 %v138
    %v140 = vpop.xlane.xlu0 %139
    %v141 = vadd.f32 %v136, %v140
    %vm142 = vcmask 7168
    %143 = vst.msk [vmem:[%s6] sm:$0xff] %vm142, %v141
    %v144 = vld [vmem:[%s5] sm:$0xff]
    %v145 = vsel %vm129, %v115, 0.0
    %v146 = vsel %vm137, %v145, 0.0
    %147 = vadd.xlane.f32.xlu0 %v146
    %v148 = vpop.xlane.xlu0 %147
    %v149 = vadd.f32 %v144, %v148
    %150 = vst.msk [vmem:[%s5] sm:$0xff] %vm142, %v149
    %151 = vst.msk [vmem:[#allocation7] sm:$0xff] %vm137, %v115
    // Predicated region
    $region26: #{tpu_custom_call.1} parent=1 // pred_check
      _
    $region27: #{tpu_custom_call.1} parent=1 // pred_check_branch
      %153 = sbr.rel (0) target = $region29
    $region28: #{tpu_custom_call.1} parent=1 // pred_region
      %s155 = ssub.s32 128, 128
      %156 = vsyncadd [#allocation6], %s155
      %s158 = sshll.u32 [#allocation7], 4
      %s159 = int_to_ptr.vmem [resolvable:$true] %s158
      %161 = dma.vmem_to_hbm [thread:$0]  %s159, 128, %s4, [#allocation6]
    $region29: #{tpu_custom_call.1} parent=1 // pred_fallthru
      _
    // Predicated region
    $region30: #{tpu_custom_call.1} parent=1 // pred_check
      _
    $region31: #{tpu_custom_call.1} parent=1 // pred_check_branch
      %163 = sbr.rel (0) target = $region33
    $region32: #{tpu_custom_call.1} parent=1 // pred_region
      _
    $region33: #{tpu_custom_call.1} parent=1 // pred_fallthru
      _
    // Predicated region
    $region34: #{tpu_custom_call.1} parent=1 // pred_check
      _
    $region35: #{tpu_custom_call.1} parent=1 // pred_check_branch
      %165 = sbr.rel (0) target = $region37
    $region36: #{tpu_custom_call.1} parent=1 // pred_region
      _
    $region37: #{tpu_custom_call.1} parent=1 // pred_fallthru
      _
    // Predicated region
    $region38: #{tpu_custom_call.1} parent=1 // pred_check
      _
    $region39: #{tpu_custom_call.1} parent=1 // pred_check_branch
      %167 = sbr.rel (0) target = $region41
    $region40: #{tpu_custom_call.1} parent=1 // pred_region
      %168 = dma.done [#allocation6], 128
    $region41: #{tpu_custom_call.1} parent=1 // pred_fallthru
      _
    // Predicated region
    $region42: #{tpu_custom_call.1} parent=1 // pred_check
      _
    $region43: #{tpu_custom_call.1} parent=1 // pred_check_branch
      %170 = sbr.rel (0) target = $region45
    $region44: #{tpu_custom_call.1} parent=1 // pred_region
      _
    $region45: #{tpu_custom_call.1} parent=1 // pred_fallthru
      _
    // Predicated region
    $region46: #{tpu_custom_call.1} parent=1 // pred_check
      _
    $region47: #{tpu_custom_call.1} parent=1 // pred_check_branch
      %172 = sbr.rel (0) target = $region49
    $region48: #{tpu_custom_call.1} parent=1 // pred_region
      _
    $region49: #{tpu_custom_call.1} parent=1 // pred_fallthru
      _
    %173 = vsyncpa [#allocation5], 1
    %174 = vsyncpa [#allocation6], 1

</llo_original>
